<compile_context>
chip_gen: v6e
topology: v6e:2x2x1
jax: 0.10.0
libtpu: 0.0.40
codegen_flags: <defaults>
</compile_context>

<pallas_src>
import functools

import jax
import jax.numpy as jnp
import numpy as np
from jax.experimental import pallas as pl
from jax.experimental.pallas import tpu as pltpu


def _block_fwd_kernel(*refs, eps, has_residual):
    if has_residual:
        (h_ref, r_ref, gamma_ref, beta_ref, w_ref, wb_ref,
         out_h_ref, out_r_ref) = refs
    else:
        (h_ref, gamma_ref, beta_ref, w_ref, wb_ref,
         out_h_ref, out_r_ref) = refs
        r_ref = None

    # Residual add in fp32 (residual_in_fp32=True); skip the add entirely for
    # the first block (residual=None) variant.
    res = h_ref[...].astype(jnp.float32)
    if has_residual:
        res = res + r_ref[...].astype(jnp.float32)
    out_r_ref[...] = res

    # LayerNorm in fp32.  Params read once; scale/shift fused into one FMA.
    gamma = gamma_ref[...].astype(jnp.float32)
    beta = beta_ref[...].astype(jnp.float32)
    bias = wb_ref[...].astype(jnp.float32)

    mean = jnp.mean(res, axis=-1, keepdims=True)
    cent = res - mean
    var = jnp.mean(cent * cent, axis=-1, keepdims=True)
    normed = cent * jax.lax.rsqrt(var + eps) * gamma + beta

    # Mixer matmul on the MXU: bf16 operands, fp32 accumulation.
    mixed = jnp.dot(normed.astype(jnp.bfloat16), w_ref[...],
                    preferred_element_type=jnp.float32) + bias
    out_h_ref[...] = mixed.astype(out_h_ref.dtype)


def _pick_row_tile(rows, max_tile):
    """Largest multiple of 8 that divides rows, capped at max_tile."""
    t = min(max_tile, rows)
    t -= t % 8
    while t >= 8:
        if rows % t == 0:
            return t
        t -= 8
    return rows  # fallback: single full-extent tile


def block_forward(hidden_states, residual, gamma, beta, w_mix, b_mix,
                  *, eps=1e-5, max_row_tile=512, out_dtype=jnp.bfloat16):
    """hidden_states/residual: (B, S, D).  Returns (hidden[out_dtype], residual[fp32])."""
    B, S, D = hidden_states.shape
    rows = B * S
    has_residual = residual is not None

    row_tile = _pick_row_tile(rows, max_row_tile)
    grid = (rows // row_tile,)

    h2 = hidden_states.reshape(rows, D)
    gamma2 = gamma.reshape(1, D).astype(jnp.float32)
    beta2 = beta.reshape(1, D).astype(jnp.float32)
    b2 = b_mix.reshape(1, D).astype(jnp.float32)
    # MXU-native dtype; halves weight VMEM residency (key for v7x 64 MiB VMEM).
    w_bf16 = w_mix.astype(jnp.bfloat16)

    act_spec = pl.BlockSpec((row_tile, D), lambda i: (i, 0))
    vec_spec = pl.BlockSpec((1, D), lambda i: (0, 0))
    w_spec = pl.BlockSpec((D, D), lambda i: (0, 0))

    in_specs = [act_spec]
    inputs = [h2]
    if has_residual:
        in_specs.append(act_spec)
        inputs.append(residual.reshape(rows, D))
    in_specs += [vec_spec, vec_spec, w_spec, vec_spec]
    inputs += [gamma2, beta2, w_bf16, b2]

    # Scoped-VMEM budget: ~2x (double-buffer) the per-step working set, with
    # headroom, clamped so it stays safe on v7x (64 MiB physical VMEM).
    out_h_bytes = jnp.dtype(out_dtype).itemsize
    block_bytes = (row_tile * D * 4                              # hidden tile
                   + (row_tile * D * 4 if has_residual else 0)   # residual tile
                   + 3 * D * 4                                   # gamma/beta/bias
                   + D * D * 2                                   # bf16 weight
                   + row_tile * D * out_h_bytes                  # out_h tile
                   + row_tile * D * 4)                           # out_r tile (fp32)
    vmem_limit = int(min(max(4 * block_bytes, 32 << 20), 48 << 20))

    out_h, out_r = pl.pallas_call(
        functools.partial(_block_fwd_kernel, eps=eps, has_residual=has_residual),
        out_shape=(
            jax.ShapeDtypeStruct((rows, D), out_dtype),
            jax.ShapeDtypeStruct((rows, D), jnp.float32),
        ),
        grid_spec=pltpu.PrefetchScalarGridSpec(
            num_scalar_prefetch=0,
            grid=grid,
            in_specs=in_specs,
            out_specs=[act_spec, act_spec],
        ),
        compiler_params=pltpu.CompilerParams(
            dimension_semantics=("parallel",),
            vmem_limit_bytes=vmem_limit),
    )(*inputs)

    return out_h.reshape(B, S, D), out_r.reshape(B, S, D)


def block_forward_ref(hidden_states, residual, gamma, beta, w_mix, b_mix,
                      *, eps=1e-5):
    """Pure-JAX fp32 reference matching the PyTorch Block (non-fused path)."""
    residual = hidden_states + residual if residual is not None else hidden_states
    x = residual.astype(jnp.float32)
    mean = jnp.mean(x, axis=-1, keepdims=True)
    var = jnp.mean((x - mean) ** 2, axis=-1, keepdims=True)
    normed = (x - mean) / jnp.sqrt(var + eps) * gamma + beta
    residual = residual.astype(jnp.float32)          # residual_in_fp32
    hidden = normed @ w_mix + b_mix                  # mixer = Linear(dim, dim)
    return hidden, residual


if __name__ == "__main__":
    # Small but lane-dense shapes: D multiple of 128, rows multiple of 8.
    B, S, D = 2, 64, 128
    key = jax.random.PRNGKey(0)
    k_h, k_r, k_g, k_be, k_w, k_b = jax.random.split(key, 6)

    hidden = jax.random.normal(k_h, (B, S, D), dtype=jnp.float32)
    residual = jax.random.normal(k_r, (B, S, D), dtype=jnp.float32)

    gamma = 1.0 + 0.1 * jax.random.normal(k_g, (D,), dtype=jnp.float32)   # LN weight
    beta = 0.05 * jax.random.normal(k_be, (D,), dtype=jnp.float32)        # LN bias
    w_mix = 0.02 * jax.random.normal(k_w, (D, D), dtype=jnp.float32)
    b_mix = 0.02 * jax.random.normal(k_b, (D,), dtype=jnp.float32)

    out_h, out_r = block_forward(hidden, residual, gamma, beta, w_mix, b_mix)
    jax.block_until_ready((out_h, out_r))

    ref_h, ref_r = block_forward_ref(hidden, residual, gamma, beta, w_mix, b_mix)
    # out_h goes through bf16 MXU operands + bf16 output -> relaxed tolerance.
    np.testing.assert_allclose(np.asarray(out_h, dtype=np.float32),
                               np.asarray(ref_h), rtol=3e-2, atol=3e-2)
    # out_r is exact fp32 (residual_in_fp32).
    np.testing.assert_allclose(np.asarray(out_r), np.asarray(ref_r),
                               rtol=1e-6, atol=1e-6)

    # residual=None branch (first block): dedicated kernel variant, no zeros DMA.
    out_h0, out_r0 = block_forward(hidden, None, gamma, beta, w_mix, b_mix)
    jax.block_until_ready((out_h0, out_r0))
    ref_h0, ref_r0 = block_forward_ref(hidden, None, gamma, beta, w_mix, b_mix)
    np.testing.assert_allclose(np.asarray(out_h0, dtype=np.float32),
                               np.asarray(ref_h0), rtol=3e-2, atol=3e-2)
    np.testing.assert_allclose(np.asarray(out_r0), np.asarray(ref_r0),
                               rtol=1e-6, atol=1e-6)

    print("KERNEL_OK")
</pallas_src>

<mosaic_0001>
module attributes {stable_mosaic.version = 11 : i64} {
  func.func @_block_fwd_kernel(%arg0: i32, %arg1: memref<128x128xf32, #tpu.memory_space<vmem>>, %arg2: memref<128x128xf32, #tpu.memory_space<vmem>>, %arg3: memref<1x128xf32, #tpu.memory_space<vmem>>, %arg4: memref<1x128xf32, #tpu.memory_space<vmem>>, %arg5: memref<128x128xbf16, #tpu.memory_space<vmem>>, %arg6: memref<1x128xf32, #tpu.memory_space<vmem>>, %arg7: memref<128x128xbf16, #tpu.memory_space<vmem>>, %arg8: memref<128x128xf32, #tpu.memory_space<vmem>>) attributes {dimension_semantics = [#tpu.dimension_semantics<parallel>], iteration_bounds = array<i64: 1>, scalar_prefetch = 0 : i64, scratch_operands = 0 : i64, tpu.core_type = #tpu.core_type<tc>, window_params = [{transform_indices = @transform_0, window_bounds = array<i64: 128, 128>}, {transform_indices = @transform_1, window_bounds = array<i64: 128, 128>}, {pipeline_mode = #tpu.pipeline_mode<synchronous>, transform_indices = @transform_2, window_bounds = array<i64: 1, 128>}, {pipeline_mode = #tpu.pipeline_mode<synchronous>, transform_indices = @transform_3, window_bounds = array<i64: 1, 128>}, {pipeline_mode = #tpu.pipeline_mode<synchronous>, transform_indices = @transform_4, window_bounds = array<i64: 128, 128>}, {pipeline_mode = #tpu.pipeline_mode<synchronous>, transform_indices = @transform_5, window_bounds = array<i64: 1, 128>}, {transform_indices = @transform_6, window_bounds = array<i64: 128, 128>}, {transform_indices = @transform_7, window_bounds = array<i64: 128, 128>}]} {
    %c0 = arith.constant 0 : index
    %c0_0 = arith.constant 0 : index
    %0 = vector.load %arg1[%c0, %c0_0] : memref<128x128xf32, #tpu.memory_space<vmem>>, vector<128x128xf32>
    %c0_1 = arith.constant 0 : index
    %c0_2 = arith.constant 0 : index
    %1 = vector.load %arg2[%c0_1, %c0_2] : memref<128x128xf32, #tpu.memory_space<vmem>>, vector<128x128xf32>
    %2 = arith.addf %0, %1 : vector<128x128xf32>
    %c0_3 = arith.constant 0 : index
    %c0_4 = arith.constant 0 : index
    %3 = vector.load %arg8[%c0_3, %c0_4] : memref<128x128xf32, #tpu.memory_space<vmem>>, vector<128x128xf32>
    tpu.vector_store %arg8[%c0_3, %c0_4], %2 {strides = array<i32>} : memref<128x128xf32, #tpu.memory_space<vmem>>, vector<128x128xf32>,
    %c0_5 = arith.constant 0 : index
    %c0_6 = arith.constant 0 : index
    %4 = vector.load %arg3[%c0_5, %c0_6] : memref<1x128xf32, #tpu.memory_space<vmem>>, vector<1x128xf32>
    %c0_7 = arith.constant 0 : index
    %c0_8 = arith.constant 0 : index
    %5 = vector.load %arg4[%c0_7, %c0_8] : memref<1x128xf32, #tpu.memory_space<vmem>>, vector<1x128xf32>
    %c0_9 = arith.constant 0 : index
    %c0_10 = arith.constant 0 : index
    %6 = vector.load %arg6[%c0_9, %c0_10] : memref<1x128xf32, #tpu.memory_space<vmem>>, vector<1x128xf32>
    %cst = arith.constant dense<0.000000e+00> : vector<128xf32>
    %7 = vector.multi_reduction <add>, %2, %cst [1] : vector<128x128xf32> to vector<128xf32>
    %8 = vector.shape_cast %7 : vector<128xf32> to vector<128x1xf32>
    %cst_11 = arith.constant 1.280000e+02 : f32
    %9 = vector.broadcast %cst_11 : f32 to vector<128x1xf32>
    %10 = arith.divf %8, %9 : vector<128x1xf32>
    %11 = vector.broadcast %10 : vector<128x1xf32> to vector<128x128xf32>
    %12 = arith.subf %2, %11 : vector<128x128xf32>
    %13 = arith.mulf %12, %12 : vector<128x128xf32>
    %cst_12 = arith.constant dense<0.000000e+00> : vector<128xf32>
    %14 = vector.multi_reduction <add>, %13, %cst_12 [1] : vector<128x128xf32> to vector<128xf32>
    %15 = vector.shape_cast %14 : vector<128xf32> to vector<128x1xf32>
    %cst_13 = arith.constant 1.280000e+02 : f32
    %16 = vector.broadcast %cst_13 : f32 to vector<128x1xf32>
    %17 = arith.divf %15, %16 : vector<128x1xf32>
    %cst_14 = arith.constant 9.99999974E-6 : f32
    %18 = vector.broadcast %cst_14 : f32 to vector<128x1xf32>
    %19 = arith.addf %17, %18 : vector<128x1xf32>
    %20 = math.rsqrt %19 : vector<128x1xf32>
    %21 = vector.broadcast %20 : vector<128x1xf32> to vector<128x128xf32>
    %22 = arith.mulf %12, %21 : vector<128x128xf32>
    %23 = vector.broadcast %4 : vector<1x128xf32> to vector<128x128xf32>
    %24 = arith.mulf %22, %23 : vector<128x128xf32>
    %25 = vector.broadcast %5 : vector<1x128xf32> to vector<128x128xf32>
    %26 = arith.addf %24, %25 : vector<128x128xf32>
    %27 = arith.truncf %26 : vector<128x128xf32> to vector<128x128xbf16>
    %c0_15 = arith.constant 0 : index
    %c0_16 = arith.constant 0 : index
    %28 = vector.load %arg5[%c0_15, %c0_16] : memref<128x128xbf16, #tpu.memory_space<vmem>>, vector<128x128xbf16>
    %cst_17 = arith.constant dense<0.000000e+00> : vector<128x128xf32>
    %29 = tpu.matmul %27, %28, %cst_17 {dimension_numbers = #tpu.dot_dimension_numbers<[1], [0], [0], [1], [0, 0, 1, 1], [], []>} : vector<128x128xbf16>, vector<128x128xbf16>, vector<128x128xf32> -> vector<128x128xf32>
    %30 = vector.broadcast %6 : vector<1x128xf32> to vector<128x128xf32>
    %31 = arith.addf %29, %30 : vector<128x128xf32>
    %32 = arith.truncf %31 : vector<128x128xf32> to vector<128x128xbf16>
    %c0_18 = arith.constant 0 : index
    %c0_19 = arith.constant 0 : index
    %33 = vector.load %arg7[%c0_18, %c0_19] : memref<128x128xbf16, #tpu.memory_space<vmem>>, vector<128x128xbf16>
    tpu.vector_store %arg7[%c0_18, %c0_19], %32 {strides = array<i32>} : memref<128x128xbf16, #tpu.memory_space<vmem>>, vector<128x128xbf16>,
    return
  }
  func.func @transform_0(%arg0: i32) -> (i32, i32) {
    %c0_i32 = arith.constant 0 : i32
    %c0_i32_0 = arith.constant 0 : i32
    return %arg0, %c0_i32 : i32, i32
  }
  func.func @transform_1(%arg0: i32) -> (i32, i32) {
    %c0_i32 = arith.constant 0 : i32
    %c0_i32_0 = arith.constant 0 : i32
    return %arg0, %c0_i32 : i32, i32
  }
  func.func @transform_2(%arg0: i32) -> (i32, i32) {
    %c0_i32 = arith.constant 0 : i32
    %c0_i32_0 = arith.constant 0 : i32
    %c0_i32_1 = arith.constant 0 : i32
    return %c0_i32, %c0_i32_0 : i32, i32
  }
  func.func @transform_3(%arg0: i32) -> (i32, i32) {
    %c0_i32 = arith.constant 0 : i32
    %c0_i32_0 = arith.constant 0 : i32
    %c0_i32_1 = arith.constant 0 : i32
    return %c0_i32, %c0_i32_0 : i32, i32
  }
  func.func @transform_4(%arg0: i32) -> (i32, i32) {
    %c0_i32 = arith.constant 0 : i32
    %c0_i32_0 = arith.constant 0 : i32
    %c0_i32_1 = arith.constant 0 : i32
    return %c0_i32, %c0_i32_0 : i32, i32
  }
  func.func @transform_5(%arg0: i32) -> (i32, i32) {
    %c0_i32 = arith.constant 0 : i32
    %c0_i32_0 = arith.constant 0 : i32
    %c0_i32_1 = arith.constant 0 : i32
    return %c0_i32, %c0_i32_0 : i32, i32
  }
  func.func @transform_6(%arg0: i32) -> (i32, i32) {
    %c0_i32 = arith.constant 0 : i32
    %c0_i32_0 = arith.constant 0 : i32
    return %arg0, %c0_i32 : i32, i32
  }
  func.func @transform_7(%arg0: i32) -> (i32, i32) {
    %c0_i32 = arith.constant 0 : i32
    %c0_i32_0 = arith.constant 0 : i32
    return %arg0, %c0_i32 : i32, i32
  }
}

</mosaic_0001>

<llo_original>
// kernel: tpu_custom_call.1
$region0: #{tpu_custom_call.1}
  #allocation0 [shape = 'u32[]', space=smem, size = 0x4, offset = 0x4, fixed_abs, tag = 'smem constant byte address 0x4 - core index']
  #allocation1 [shape = 'u32[144,128]{1,0:T(1,128)}', space=vmem, size = 0x12000, scoped, tag = 'internal scratch']
  %s0 = inlined_call_operand.hbm [shape: f32[128,128], index: 0, kind: input, shape index: {}]
  %s1 = inlined_call_operand.hbm [shape: f32[128,128], index: 1, kind: input, shape index: {}]
  %s2 = inlined_call_operand.vmem [shape: f32[1,128], index: 2, kind: input, shape index: {}]
  %s3 = inlined_call_operand.vmem [shape: f32[1,128], index: 3, kind: input, shape index: {}]
  %s4 = inlined_call_operand.hbm [shape: bf16[128,128], index: 4, kind: input, shape index: {}]
  %s5 = inlined_call_operand.vmem [shape: f32[1,128], index: 5, kind: input, shape index: {}]
  %s6 = inlined_call_operand.hbm [shape: bf16[128,128], index: 6, kind: output, shape index: {0}]
  %s7 = inlined_call_operand.hbm [shape: f32[128,128], index: 7, kind: output, shape index: {1}]
  %8 = xla_tuple %s6, %s7
  %s9 = sld [smem:[#allocation0]]
  $region54: #{tpu_custom_call.1} parent=0
    _
  %s11 = ssub.s32 1, %s9
  %s12 = scalar_select 0, %s11, %s9
  $region1: #{tpu_custom_call.1} parent=0
    #allocation2 [shape = 'u8[65536]{0}', space=vmem, size = 0x10000, scoped, tag = 'input window, operand 0, single buffered']
    #allocation3 [shape = 's32[1]{0}', space=sflag, size = 0x4, scoped, tag = 'scoped memory for tpu_custom_call.1']
    #allocation4 [shape = 's32[1]{0}', space=sflag, size = 0x4, scoped, tag = 'scoped memory for tpu_custom_call.1']
    #allocation5 [shape = 'u8[65536]{0}', space=vmem, size = 0x10000, scoped, tag = 'input window, operand 1, single buffered']
    #allocation6 [shape = 's32[1]{0}', space=sflag, size = 0x4, scoped, tag = 'scoped memory for tpu_custom_call.1']
    #allocation7 [shape = 'u8[32768]{0}', space=vmem, size = 0x8000, scoped, tag = 'input window, operand 4, single buffered']
    #allocation8 [shape = 'u8[32768]{0}', space=vmem, size = 0x8000, scoped, tag = 'output window, operand 0, single buffered']
    #allocation9 [shape = 'u8[65536]{0}', space=vmem, size = 0x10000, scoped, tag = 'output window, operand 1, single buffered']
    #allocation10 [shape = 's32[1]{0}', space=sflag, size = 0x4, scoped, tag = 'scoped memory for tpu_custom_call.1']
    %13 = vsyncpa [#allocation3], 0
    %14 = vsyncpa [#allocation6], 0
    %15 = vsyncpa [#allocation4], 0
    %16 = vsyncpa [#allocation10], 0
    // Predicated region
    $region2: #{tpu_custom_call.1} parent=1 // pred_check
      _
    $region3: #{tpu_custom_call.1} parent=1 // pred_check_branch
      %18 = sbr.rel (0) target = $region5
    $region4: #{tpu_custom_call.1} parent=1 // pred_region
      %s20 = ssub.s32 2048, 2048
      %21 = vsyncadd [#allocation3], %s20
      %s22 = sshll.u32 [#allocation2], 4
      %s23 = int_to_ptr.vmem [resolvable:$true] %s22
      %28 = dma.hbm_to_vmem [thread:$0]  %s0, 2048, %s23, [#allocation3], 128, 128, 8
    $region5: #{tpu_custom_call.1} parent=1 // pred_fallthru
      _
    // Predicated region
    $region6: #{tpu_custom_call.1} parent=1 // pred_check
      _
    $region7: #{tpu_custom_call.1} parent=1 // pred_check_branch
      %30 = sbr.rel (0) target = $region9
    $region8: #{tpu_custom_call.1} parent=1 // pred_region
      %s32 = ssub.s32 2048, 2048
      %33 = vsyncadd [#allocation6], %s32
      %s34 = sshll.u32 [#allocation5], 4
      %s35 = int_to_ptr.vmem [resolvable:$true] %s34
      %40 = dma.hbm_to_vmem [thread:$0]  %s1, 2048, %s35, [#allocation6], 128, 128, 8
    $region9: #{tpu_custom_call.1} parent=1 // pred_fallthru
      _
    // Predicated region
    $region10: #{tpu_custom_call.1} parent=1 // pred_check
      _
    $region11: #{tpu_custom_call.1} parent=1 // pred_check_branch
      %42 = sbr.rel (0) target = $region13
    $region12: #{tpu_custom_call.1} parent=1 // pred_region
      _
    $region13: #{tpu_custom_call.1} parent=1 // pred_fallthru
      _
    // Predicated region
    $region14: #{tpu_custom_call.1} parent=1 // pred_check
      _
    $region15: #{tpu_custom_call.1} parent=1 // pred_check_branch
      %44 = sbr.rel (0) target = $region17
    $region16: #{tpu_custom_call.1} parent=1 // pred_region
      _
    $region17: #{tpu_custom_call.1} parent=1 // pred_fallthru
      _
    // Predicated region
    $region18: #{tpu_custom_call.1} parent=1 // pred_check
      _
    $region19: #{tpu_custom_call.1} parent=1 // pred_check_branch
      %46 = sbr.rel (0) target = $region21
    $region20: #{tpu_custom_call.1} parent=1 // pred_region
      %s48 = ssub.s32 1024, 1024
      %49 = vsyncadd [#allocation6], %s48
      %s50 = sshll.u32 [#allocation7], 4
      %s51 = int_to_ptr.vmem [resolvable:$true] %s50
      %56 = dma.hbm_to_vmem [thread:$0]  %s4, 1024, %s51, [#allocation6], 64, 64, 4
    $region21: #{tpu_custom_call.1} parent=1 // pred_fallthru
      _
    // Predicated region
    $region22: #{tpu_custom_call.1} parent=1 // pred_check
      _
    $region23: #{tpu_custom_call.1} parent=1 // pred_check_branch
      %58 = sbr.rel (0) target = $region25
    $region24: #{tpu_custom_call.1} parent=1 // pred_region
      _
    $region25: #{tpu_custom_call.1} parent=1 // pred_fallthru
      _
    // Predicated region
    $region26: #{tpu_custom_call.1} parent=1 // pred_check
      _
    $region27: #{tpu_custom_call.1} parent=1 // pred_check_branch
      %60 = sbr.rel (0) target = $region29
    $region28: #{tpu_custom_call.1} parent=1 // pred_region
      %61 = dma.done [#allocation3], 2048
    $region29: #{tpu_custom_call.1} parent=1 // pred_fallthru
      _
    // Predicated region
    $region30: #{tpu_custom_call.1} parent=1 // pred_check
      _
    $region31: #{tpu_custom_call.1} parent=1 // pred_check_branch
      %63 = sbr.rel (0) target = $region33
    $region32: #{tpu_custom_call.1} parent=1 // pred_region
      %64 = dma.done [#allocation6], 2048
    $region33: #{tpu_custom_call.1} parent=1 // pred_fallthru
      _
    // Predicated region
    $region34: #{tpu_custom_call.1} parent=1 // pred_check
      _
    $region35: #{tpu_custom_call.1} parent=1 // pred_check_branch
      %66 = sbr.rel (0) target = $region37
    $region36: #{tpu_custom_call.1} parent=1 // pred_region
      %67 = dma.done [#allocation6], 1024
    $region37: #{tpu_custom_call.1} parent=1 // pred_fallthru
      _
    %v69 = vld [vmem:[#allocation2] sm:$0xff]
    %v70 = vld [vmem:[#allocation2 + $0x8] sm:$0xff]
    %v71 = vld [vmem:[#allocation2 + $0x10] sm:$0xff]
    %v72 = vld [vmem:[#allocation2 + $0x18] sm:$0xff]
    %v73 = vld [vmem:[#allocation2 + $0x20] sm:$0xff]
    %v74 = vld [vmem:[#allocation2 + $0x28] sm:$0xff]
    %v75 = vld [vmem:[#allocation2 + $0x30] sm:$0xff]
    %v76 = vld [vmem:[#allocation2 + $0x38] sm:$0xff]
    %v77 = vld [vmem:[#allocation2 + $0x40] sm:$0xff]
    %v78 = vld [vmem:[#allocation2 + $0x48] sm:$0xff]
    %v79 = vld [vmem:[#allocation2 + $0x50] sm:$0xff]
    %v80 = vld [vmem:[#allocation2 + $0x58] sm:$0xff]
    %v81 = vld [vmem:[#allocation2 + $0x60] sm:$0xff]
    %v82 = vld [vmem:[#allocation2 + $0x68] sm:$0xff]
    %v83 = vld [vmem:[#allocation2 + $0x70] sm:$0xff]
    %v84 = vld [vmem:[#allocation2 + $0x78] sm:$0xff]
    %v85 = vld [vmem:[#allocation5] sm:$0xff]
    %v86 = vld [vmem:[#allocation5 + $0x8] sm:$0xff]
    %v87 = vld [vmem:[#allocation5 + $0x10] sm:$0xff]
    %v88 = vld [vmem:[#allocation5 + $0x18] sm:$0xff]
    %v89 = vld [vmem:[#allocation5 + $0x20] sm:$0xff]
    %v90 = vld [vmem:[#allocation5 + $0x28] sm:$0xff]
    %v91 = vld [vmem:[#allocation5 + $0x30] sm:$0xff]
    %v92 = vld [vmem:[#allocation5 + $0x38] sm:$0xff]
    %v93 = vld [vmem:[#allocation5 + $0x40] sm:$0xff]
    %v94 = vld [vmem:[#allocation5 + $0x48] sm:$0xff]
    %v95 = vld [vmem:[#allocation5 + $0x50] sm:$0xff]
    %v96 = vld [vmem:[#allocation5 + $0x58] sm:$0xff]
    %v97 = vld [vmem:[#allocation5 + $0x60] sm:$0xff]
    %v98 = vld [vmem:[#allocation5 + $0x68] sm:$0xff]
    %v99 = vld [vmem:[#allocation5 + $0x70] sm:$0xff]
    %v100 = vld [vmem:[#allocation5 + $0x78] sm:$0xff]
    %v101 = vadd.f32 %v69, %v85
    %v102 = vadd.f32 %v70, %v86
    %v103 = vadd.f32 %v71, %v87
    %v104 = vadd.f32 %v72, %v88
    %v105 = vadd.f32 %v73, %v89
    %v106 = vadd.f32 %v74, %v90
    %v107 = vadd.f32 %v75, %v91
    %v108 = vadd.f32 %v76, %v92
    %v109 = vadd.f32 %v77, %v93
    %v110 = vadd.f32 %v78, %v94
    %v111 = vadd.f32 %v79, %v95
    %v112 = vadd.f32 %v80, %v96
    %v113 = vadd.f32 %v81, %v97
    %v114 = vadd.f32 %v82, %v98
    %v115 = vadd.f32 %v83, %v99
    %v116 = vadd.f32 %v84, %v100
    %117 = vst [vmem:[#allocation9] sm:$0xff] %v101
    %118 = vst [vmem:[#allocation9 + $0x8] sm:$0xff] %v102
    %119 = vst [vmem:[#allocation9 + $0x10] sm:$0xff] %v103
    %120 = vst [vmem:[#allocation9 + $0x18] sm:$0xff] %v104
    %121 = vst [vmem:[#allocation9 + $0x20] sm:$0xff] %v105
    %122 = vst [vmem:[#allocation9 + $0x28] sm:$0xff] %v106
    %123 = vst [vmem:[#allocation9 + $0x30] sm:$0xff] %v107
    %124 = vst [vmem:[#allocation9 + $0x38] sm:$0xff] %v108
    %125 = vst [vmem:[#allocation9 + $0x40] sm:$0xff] %v109
    %126 = vst [vmem:[#allocation9 + $0x48] sm:$0xff] %v110
    %127 = vst [vmem:[#allocation9 + $0x50] sm:$0xff] %v111
    %128 = vst [vmem:[#allocation9 + $0x58] sm:$0xff] %v112
    %129 = vst [vmem:[#allocation9 + $0x60] sm:$0xff] %v113
    %130 = vst [vmem:[#allocation9 + $0x68] sm:$0xff] %v114
    %131 = vst [vmem:[#allocation9 + $0x70] sm:$0xff] %v115
    %132 = vst [vmem:[#allocation9 + $0x78] sm:$0xff] %v116
    %v133 = vld [vmem:[%s2] sm:$0x1]
    %v134 = vld [vmem:[%s3] sm:$0x1]
    %v135 = vld [vmem:[%s5] sm:$0x1]
    %136 = vadd.xlane.f32.xlu0 %v101
    %v137 = vpop.xlane.xlu0 %136
    %138 = vadd.xlane.f32.xlu0 %v102
    %v139 = vpop.xlane.xlu0 %138
    %140 = vadd.xlane.f32.xlu0 %v103
    %v141 = vpop.xlane.xlu0 %140
    %142 = vadd.xlane.f32.xlu0 %v104
    %v143 = vpop.xlane.xlu0 %142
    %144 = vadd.xlane.f32.xlu0 %v105
    %v145 = vpop.xlane.xlu0 %144
    %146 = vadd.xlane.f32.xlu0 %v106
    %v147 = vpop.xlane.xlu0 %146
    %148 = vadd.xlane.f32.xlu0 %v107
    %v149 = vpop.xlane.xlu0 %148
    %150 = vadd.xlane.f32.xlu0 %v108
    %v151 = vpop.xlane.xlu0 %150
    %152 = vadd.xlane.f32.xlu0 %v109
    %v153 = vpop.xlane.xlu0 %152
    %154 = vadd.xlane.f32.xlu0 %v110
    %v155 = vpop.xlane.xlu0 %154
    %156 = vadd.xlane.f32.xlu0 %v111
    %v157 = vpop.xlane.xlu0 %156
    %158 = vadd.xlane.f32.xlu0 %v112
    %v159 = vpop.xlane.xlu0 %158
    %160 = vadd.xlane.f32.xlu0 %v113
    %v161 = vpop.xlane.xlu0 %160
    %162 = vadd.xlane.f32.xlu0 %v114
    %v163 = vpop.xlane.xlu0 %162
    %164 = vadd.xlane.f32.xlu0 %v115
    %v165 = vpop.xlane.xlu0 %164
    %166 = vadd.xlane.f32.xlu0 %v116
    %v167 = vpop.xlane.xlu0 %166
    %v168 = vrcp.pop 128.0
    %v169 = vmul.f32 %v137, %v168
    %v170 = vmul.f32 %v139, %v168
    %v171 = vmul.f32 %v141, %v168
    %v172 = vmul.f32 %v143, %v168
    %v173 = vmul.f32 %v145, %v168
    %v174 = vmul.f32 %v147, %v168
    %v175 = vmul.f32 %v149, %v168
    %v176 = vmul.f32 %v151, %v168
    %v177 = vmul.f32 %v153, %v168
    %v178 = vmul.f32 %v155, %v168
    %v179 = vmul.f32 %v157, %v168
    %v180 = vmul.f32 %v159, %v168
    %v181 = vmul.f32 %v161, %v168
    %v182 = vmul.f32 %v163, %v168
    %v183 = vmul.f32 %v165, %v168
    %v184 = vmul.f32 %v167, %v168
    %v185 = vsub.f32 %v101, %v169
    %v186 = vsub.f32 %v102, %v170
    %v187 = vsub.f32 %v103, %v171
    %v188 = vsub.f32 %v104, %v172
    %v189 = vsub.f32 %v105, %v173
    %v190 = vsub.f32 %v106, %v174
    %v191 = vsub.f32 %v107, %v175
    %v192 = vsub.f32 %v108, %v176
    %v193 = vsub.f32 %v109, %v177
    %v194 = vsub.f32 %v110, %v178
    %v195 = vsub.f32 %v111, %v179
    %v196 = vsub.f32 %v112, %v180
    %v197 = vsub.f32 %v113, %v181
    %v198 = vsub.f32 %v114, %v182
    %v199 = vsub.f32 %v115, %v183
    %v200 = vsub.f32 %v116, %v184
    %v201 = vmul.f32 %v185, %v185
    %v202 = vmul.f32 %v186, %v186
    %v203 = vmul.f32 %v187, %v187
    %v204 = vmul.f32 %v188, %v188
    %v205 = vmul.f32 %v189, %v189
    %v206 = vmul.f32 %v190, %v190
    %v207 = vmul.f32 %v191, %v191
    %v208 = vmul.f32 %v192, %v192
    %v209 = vmul.f32 %v193, %v193
    %v210 = vmul.f32 %v194, %v194
    %v211 = vmul.f32 %v195, %v195
    %v212 = vmul.f32 %v196, %v196
    %v213 = vmul.f32 %v197, %v197
    %v214 = vmul.f32 %v198, %v198
    %v215 = vmul.f32 %v199, %v199
    %v216 = vmul.f32 %v200, %v200
    %217 = vadd.xlane.f32.xlu0 %v201
    %v218 = vpop.xlane.xlu0 %217
    %219 = vadd.xlane.f32.xlu0 %v202
    %v220 = vpop.xlane.xlu0 %219
    %221 = vadd.xlane.f32.xlu0 %v203
    %v222 = vpop.xlane.xlu0 %221
    %223 = vadd.xlane.f32.xlu0 %v204
    %v224 = vpop.xlane.xlu0 %223
    %225 = vadd.xlane.f32.xlu0 %v205
    %v226 = vpop.xlane.xlu0 %225
    %227 = vadd.xlane.f32.xlu0 %v206
    %v228 = vpop.xlane.xlu0 %227
    %229 = vadd.xlane.f32.xlu0 %v207
    %v230 = vpop.xlane.xlu0 %229
    %231 = vadd.xlane.f32.xlu0 %v208
    %v232 = vpop.xlane.xlu0 %231
    %233 = vadd.xlane.f32.xlu0 %v209
    %v234 = vpop.xlane.xlu0 %233
    %235 = vadd.xlane.f32.xlu0 %v210
    %v236 = vpop.xlane.xlu0 %235
    %237 = vadd.xlane.f32.xlu0 %v211
    %v238 = vpop.xlane.xlu0 %237
    %239 = vadd.xlane.f32.xlu0 %v212
    %v240 = vpop.xlane.xlu0 %239
    %241 = vadd.xlane.f32.xlu0 %v213
    %v242 = vpop.xlane.xlu0 %241
    %243 = vadd.xlane.f32.xlu0 %v214
    %v244 = vpop.xlane.xlu0 %243
    %245 = vadd.xlane.f32.xlu0 %v215
    %v246 = vpop.xlane.xlu0 %245
    %247 = vadd.xlane.f32.xlu0 %v216
    %v248 = vpop.xlane.xlu0 %247
    %v249 = vmul.f32 %v218, %v168
    %v250 = vmul.f32 %v220, %v168
    %v251 = vmul.f32 %v222, %v168
    %v252 = vmul.f32 %v224, %v168
    %v253 = vmul.f32 %v226, %v168
    %v254 = vmul.f32 %v228, %v168
    %v255 = vmul.f32 %v230, %v168
    %v256 = vmul.f32 %v232, %v168
    %v257 = vmul.f32 %v234, %v168
    %v258 = vmul.f32 %v236, %v168
    %v259 = vmul.f32 %v238, %v168
    %v260 = vmul.f32 %v240, %v168
    %v261 = vmul.f32 %v242, %v168
    %v262 = vmul.f32 %v244, %v168
    %v263 = vmul.f32 %v246, %v168
    %v264 = vmul.f32 %v248, %v168
    %v265 = vadd.f32 %v249, 1e-05
    %v266 = vadd.f32 %v250, 1e-05
    %v267 = vadd.f32 %v251, 1e-05
    %v268 = vadd.f32 %v252, 1e-05
    %v269 = vadd.f32 %v253, 1e-05
    %v270 = vadd.f32 %v254, 1e-05
    %v271 = vadd.f32 %v255, 1e-05
    %v272 = vadd.f32 %v256, 1e-05
    %v273 = vadd.f32 %v257, 1e-05
    %v274 = vadd.f32 %v258, 1e-05
    %v275 = vadd.f32 %v259, 1e-05
    %v276 = vadd.f32 %v260, 1e-05
    %v277 = vadd.f32 %v261, 1e-05
    %v278 = vadd.f32 %v262, 1e-05
    %v279 = vadd.f32 %v263, 1e-05
    %v280 = vadd.f32 %v264, 1e-05
    %v281 = vrsqrt.pop %v265
    %v282 = vrsqrt.pop %v266
    %v283 = vrsqrt.pop %v267
    %v284 = vrsqrt.pop %v268
    %v285 = vrsqrt.pop %v269
    %v286 = vrsqrt.pop %v270
    %v287 = vrsqrt.pop %v271
    %v288 = vrsqrt.pop %v272
    %v289 = vrsqrt.pop %v273
    %v290 = vrsqrt.pop %v274
    %v291 = vrsqrt.pop %v275
    %v292 = vrsqrt.pop %v276
    %v293 = vrsqrt.pop %v277
    %v294 = vrsqrt.pop %v278
    %v295 = vrsqrt.pop %v279
    %v296 = vrsqrt.pop %v280
    %v297 = vmul.f32 %v185, %v281
    %v298 = vmul.f32 %v186, %v282
    %v299 = vmul.f32 %v187, %v283
    %v300 = vmul.f32 %v188, %v284
    %v301 = vmul.f32 %v189, %v285
    %v302 = vmul.f32 %v190, %v286
    %v303 = vmul.f32 %v191, %v287
    %v304 = vmul.f32 %v192, %v288
    %v305 = vmul.f32 %v193, %v289
    %v306 = vmul.f32 %v194, %v290
    %v307 = vmul.f32 %v195, %v291
    %v308 = vmul.f32 %v196, %v292
    %v309 = vmul.f32 %v197, %v293
    %v310 = vmul.f32 %v198, %v294
    %v311 = vmul.f32 %v199, %v295
    %v312 = vmul.f32 %v200, %v296
    %v314 = vlaneseq
    %v315 = vshrl.u32 %v314, 7
    %v316 = vsub.s32 0, %v315
    %v317 = vrot.slane %v133, %v316
    %v319 = vmul.f32 %v297, %v317
    %v320 = vmul.f32 %v298, %v317
    %v321 = vmul.f32 %v299, %v317
    %v322 = vmul.f32 %v300, %v317
    %v323 = vmul.f32 %v301, %v317
    %v324 = vmul.f32 %v302, %v317
    %v325 = vmul.f32 %v303, %v317
    %v326 = vmul.f32 %v304, %v317
    %v327 = vmul.f32 %v305, %v317
    %v328 = vmul.f32 %v306, %v317
    %v329 = vmul.f32 %v307, %v317
    %v330 = vmul.f32 %v308, %v317
    %v331 = vmul.f32 %v309, %v317
    %v332 = vmul.f32 %v310, %v317
    %v333 = vmul.f32 %v311, %v317
    %v334 = vmul.f32 %v312, %v317
    %v336 = vlaneseq
    %v337 = vshrl.u32 %v336, 7
    %v338 = vsub.s32 0, %v337
    %v339 = vrot.slane %v134, %v338
    %v341 = vadd.f32 %v319, %v339
    %v342 = vadd.f32 %v320, %v339
    %v343 = vadd.f32 %v321, %v339
    %v344 = vadd.f32 %v322, %v339
    %v345 = vadd.f32 %v323, %v339
    %v346 = vadd.f32 %v324, %v339
    %v347 = vadd.f32 %v325, %v339
    %v348 = vadd.f32 %v326, %v339
    %v349 = vadd.f32 %v327, %v339
    %v350 = vadd.f32 %v328, %v339
    %v351 = vadd.f32 %v329, %v339
    %v352 = vadd.f32 %v330, %v339
    %v353 = vadd.f32 %v331, %v339
    %v354 = vadd.f32 %v332, %v339
    %v355 = vadd.f32 %v333, %v339
    %v356 = vadd.f32 %v334, %v339
    %v357 = vpack.c.bf16 %v342, %v341
    %v358 = vpack.c.bf16 %v344, %v343
    %v359 = vpack.c.bf16 %v346, %v345
    %v360 = vpack.c.bf16 %v348, %v347
    %v361 = vpack.c.bf16 %v350, %v349
    %v362 = vpack.c.bf16 %v352, %v351
    %v363 = vpack.c.bf16 %v354, %v353
    %v364 = vpack.c.bf16 %v356, %v355
    %v365 = vld [vmem:[#allocation7] sm:$0xf]
    %v366 = vld [vmem:[#allocation7 + $0x4] sm:$0xf]
    %v367 = vld [vmem:[#allocation7 + $0x8] sm:$0xf]
    %v368 = vld [vmem:[#allocation7 + $0xc] sm:$0xf]
    %v369 = vld [vmem:[#allocation7 + $0x10] sm:$0xf]
    %v370 = vld [vmem:[#allocation7 + $0x14] sm:$0xf]
    %v371 = vld [vmem:[#allocation7 + $0x18] sm:$0xf]
    %v372 = vld [vmem:[#allocation7 + $0x1c] sm:$0xf]
    %v373 = vld [vmem:[#allocation7 + $0x20] sm:$0xf]
    %v374 = vld [vmem:[#allocation7 + $0x24] sm:$0xf]
    %v375 = vld [vmem:[#allocation7 + $0x28] sm:$0xf]
    %v376 = vld [vmem:[#allocation7 + $0x2c] sm:$0xf]
    %v377 = vld [vmem:[#allocation7 + $0x30] sm:$0xf]
    %v378 = vld [vmem:[#allocation7 + $0x34] sm:$0xf]
    %v379 = vld [vmem:[#allocation7 + $0x38] sm:$0xf]
    %v380 = vld [vmem:[#allocation7 + $0x3c] sm:$0xf]
    %v382 = vlaneseq
    %v383 = vshrl.u32 %v382, 7
    %v384 = vsub.s32 0, %v383
    %v385 = vrot.slane %v135, %v384
    %v403 = vunpack.c.l.b16 %v365
    %v404 = vunpack.c.l.b16 %v366
    %v405 = vunpack.c.l.b16 %v367
    %v406 = vunpack.c.l.b16 %v368
    %v407 = vunpack.c.l.b16 %v369
    %v408 = vunpack.c.l.b16 %v370
    %v409 = vunpack.c.l.b16 %v371
    %v410 = vunpack.c.l.b16 %v372
    %v411 = vunpack.c.l.b16 %v373
    %v412 = vunpack.c.l.b16 %v374
    %v413 = vunpack.c.l.b16 %v375
    %v414 = vunpack.c.l.b16 %v376
    %v415 = vunpack.c.l.b16 %v377
    %v416 = vunpack.c.l.b16 %v378
    %v417 = vunpack.c.l.b16 %v379
    %v418 = vunpack.c.l.b16 %v380
    %v419 = vpack.c.b16 %v404, %v403
    %v420 = vpack.c.b16 %v406, %v405
    %v421 = vpack.c.b16 %v408, %v407
    %v422 = vpack.c.b16 %v410, %v409
    %v423 = vpack.c.b16 %v412, %v411
    %v424 = vpack.c.b16 %v414, %v413
    %v425 = vpack.c.b16 %v416, %v415
    %v426 = vpack.c.b16 %v418, %v417
    %435 = vmatprep.subr.bf16.mxu0 0
    %436 = vmatpush1.bf16.msra.mxu0 %v426
    %437 = vmatprep.subr.bf16.mxu0 0
    %438 = vmatpush1.bf16.msra.mxu0 %v425
    %439 = vmatprep.subr.bf16.mxu0 0
    %440 = vmatpush1.bf16.msra.mxu0 %v424
    %441 = vmatprep.subr.bf16.mxu0 0
    %442 = vmatpush1.bf16.msra.mxu0 %v423
    %443 = vmatprep.subr.bf16.mxu0 0
    %444 = vmatpush1.bf16.msra.mxu0 %v422
    %445 = vmatprep.subr.bf16.mxu0 0
    %446 = vmatpush1.bf16.msra.mxu0 %v421
    %447 = vmatprep.subr.bf16.mxu0 0
    %448 = vmatpush1.bf16.msra.mxu0 %v420
    %449 = vmatprep.subr.bf16.mxu0 0
    %450 = vmatpush1.bf16.msra.mxu0 %v419
    %451 = vmatprep.subr.bf16.mxu0 0
    %452 = vmatpush2.bf16.msra.mxu0 0
    %453 = vmatprep.subr.bf16.mxu0 0
    %454 = vmatpush2.bf16.msra.mxu0 0
    %455 = vmatprep.subr.bf16.mxu0 0
    %456 = vmatpush2.bf16.msra.mxu0 0
    %457 = vmatprep.subr.bf16.mxu0 0
    %458 = vmatpush2.bf16.msra.mxu0 0
    %459 = vmatprep.subr.bf16.mxu0 0
    %460 = vmatpush2.bf16.msra.mxu0 0
    %461 = vmatprep.subr.bf16.mxu0 0
    %462 = vmatpush2.bf16.msra.mxu0 0
    %463 = vmatprep.subr.bf16.mxu0 0
    %464 = vmatpush2.bf16.msra.mxu0 0
    %465 = vmatprep.subr.bf16.mxu0 0
    %466 = vmatpush2.bf16.msra.mxu0 0
    %467 = vmatprep.mubr.bf16.mxu0 0
    %468 = vmatmul.mubr.bf16.gmra.mxu0 %v357
    %v469 = vpop.f32.mrf.mxu0
    %v470 = vadd.f32 %v385, %v469
    %v471 = vpop.f32.mrf.mxu0
    %v472 = vpop.f32.mrf.mxu0
    %v473 = vadd.f32 %v385, %v472
    %v474 = vpop.f32.mrf.mxu0
    %475 = vmatprep.mubr.bf16.mxu0 0
    %476 = vmatmul.mubr.bf16.gmra.mxu0 %v358
    %v477 = vpop.f32.mrf.mxu0
    %v478 = vadd.f32 %v385, %v477
    %v479 = vpop.f32.mrf.mxu0
    %v480 = vpop.f32.mrf.mxu0
    %v481 = vadd.f32 %v385, %v480
    %v482 = vpop.f32.mrf.mxu0
    %483 = vmatprep.mubr.bf16.mxu0 0
    %484 = vmatmul.mubr.bf16.gmra.mxu0 %v359
    %v485 = vpop.f32.mrf.mxu0
    %v486 = vadd.f32 %v385, %v485
    %v487 = vpop.f32.mrf.mxu0
    %v488 = vpop.f32.mrf.mxu0
    %v489 = vadd.f32 %v385, %v488
    %v490 = vpop.f32.mrf.mxu0
    %491 = vmatprep.mubr.bf16.mxu0 0
    %492 = vmatmul.mubr.bf16.gmra.mxu0 %v360
    %v493 = vpop.f32.mrf.mxu0
    %v494 = vadd.f32 %v385, %v493
    %v495 = vpop.f32.mrf.mxu0
    %v496 = vpop.f32.mrf.mxu0
    %v497 = vadd.f32 %v385, %v496
    %v498 = vpop.f32.mrf.mxu0
    %499 = vmatprep.mubr.bf16.mxu0 0
    %500 = vmatmul.mubr.bf16.gmra.mxu0 %v361
    %v501 = vpop.f32.mrf.mxu0
    %v502 = vadd.f32 %v385, %v501
    %v503 = vpop.f32.mrf.mxu0
    %v504 = vpop.f32.mrf.mxu0
    %v505 = vadd.f32 %v385, %v504
    %v506 = vpop.f32.mrf.mxu0
    %507 = vmatprep.mubr.bf16.mxu0 0
    %508 = vmatmul.mubr.bf16.gmra.mxu0 %v362
    %v509 = vpop.f32.mrf.mxu0
    %v510 = vadd.f32 %v385, %v509
    %v511 = vpop.f32.mrf.mxu0
    %v512 = vpop.f32.mrf.mxu0
    %v513 = vadd.f32 %v385, %v512
    %v514 = vpop.f32.mrf.mxu0
    %515 = vmatprep.mubr.bf16.mxu0 0
    %516 = vmatmul.mubr.bf16.gmra.mxu0 %v363
    %v517 = vpop.f32.mrf.mxu0
    %v518 = vadd.f32 %v385, %v517
    %v519 = vpop.f32.mrf.mxu0
    %v520 = vpop.f32.mrf.mxu0
    %v521 = vadd.f32 %v385, %v520
    %v522 = vpop.f32.mrf.mxu0
    %523 = vmatprep.mubr.bf16.mxu0 0
    %524 = vmatmul.mubr.bf16.gmra.mxu0 %v364
    %v525 = vpop.f32.mrf.mxu0
    %v526 = vadd.f32 %v385, %v525
    %v527 = vpop.f32.mrf.mxu0
    %v528 = vpop.f32.mrf.mxu0
    %v529 = vadd.f32 %v385, %v528
    %v530 = vpop.f32.mrf.mxu0
    %531 = vdwg.mxu0
    %v532 = vpack.c.bf16 %v473, %v470
    %v533 = vpack.c.bf16 %v481, %v478
    %v534 = vpack.c.bf16 %v489, %v486
    %v535 = vpack.c.bf16 %v497, %v494
    %v536 = vpack.c.bf16 %v505, %v502
    %v537 = vpack.c.bf16 %v513, %v510
    %v538 = vpack.c.bf16 %v521, %v518
    %v539 = vpack.c.bf16 %v529, %v526
    %v548 = vunpack.c.l.b16 %v532
    %v549 = vunpack.c.h.b16 %v532
    %v550 = vunpack.c.l.b16 %v533
    %v551 = vunpack.c.h.b16 %v533
    %v552 = vunpack.c.l.b16 %v534
    %v553 = vunpack.c.h.b16 %v534
    %v554 = vunpack.c.l.b16 %v535
    %v555 = vunpack.c.h.b16 %v535
    %v556 = vunpack.c.l.b16 %v536
    %v557 = vunpack.c.h.b16 %v536
    %v558 = vunpack.c.l.b16 %v537
    %v559 = vunpack.c.h.b16 %v537
    %v560 = vunpack.c.l.b16 %v538
    %v561 = vunpack.c.h.b16 %v538
    %v562 = vunpack.c.l.b16 %v539
    %v563 = vunpack.c.h.b16 %v539
    %v564 = vpack.c.b16 %v548, %v548
    %v565 = vpack.c.b16 %v549, %v549
    %v566 = vpack.c.b16 %v550, %v550
    %v567 = vpack.c.b16 %v551, %v551
    %v568 = vpack.c.b16 %v552, %v552
    %v569 = vpack.c.b16 %v553, %v553
    %v570 = vpack.c.b16 %v554, %v554
    %v571 = vpack.c.b16 %v555, %v555
    %v572 = vpack.c.b16 %v556, %v556
    %v573 = vpack.c.b16 %v557, %v557
    %v574 = vpack.c.b16 %v558, %v558
    %v575 = vpack.c.b16 %v559, %v559
    %v576 = vpack.c.b16 %v560, %v560
    %v577 = vpack.c.b16 %v561, %v561
    %v578 = vpack.c.b16 %v562, %v562
    %v579 = vpack.c.b16 %v563, %v563
    %596 = vst [vmem:[#allocation8] sm:$0xf] %v564
    %597 = vst [vmem:[#allocation8 + $0x4] sm:$0xf] %v565
    %598 = vst [vmem:[#allocation8 + $0x8] sm:$0xf] %v566
    %599 = vst [vmem:[#allocation8 + $0xc] sm:$0xf] %v567
    %600 = vst [vmem:[#allocation8 + $0x10] sm:$0xf] %v568
    %601 = vst [vmem:[#allocation8 + $0x14] sm:$0xf] %v569
    %602 = vst [vmem:[#allocation8 + $0x18] sm:$0xf] %v570
    %603 = vst [vmem:[#allocation8 + $0x1c] sm:$0xf] %v571
    %604 = vst [vmem:[#allocation8 + $0x20] sm:$0xf] %v572
    %605 = vst [vmem:[#allocation8 + $0x24] sm:$0xf] %v573
    %606 = vst [vmem:[#allocation8 + $0x28] sm:$0xf] %v574
    %607 = vst [vmem:[#allocation8 + $0x2c] sm:$0xf] %v575
    %608 = vst [vmem:[#allocation8 + $0x30] sm:$0xf] %v576
    %609 = vst [vmem:[#allocation8 + $0x34] sm:$0xf] %v577
    %610 = vst [vmem:[#allocation8 + $0x38] sm:$0xf] %v578
    %611 = vst [vmem:[#allocation8 + $0x3c] sm:$0xf] %v579
    // Predicated region
    $region38: #{tpu_custom_call.1} parent=1 // pred_check
      _
    $region39: #{tpu_custom_call.1} parent=1 // pred_check_branch
      %613 = sbr.rel (0) target = $region41
    $region40: #{tpu_custom_call.1} parent=1 // pred_region
      %s615 = ssub.s32 1024, 1024
      %616 = vsyncadd [#allocation4], %s615
      %s617 = sshll.u32 [#allocation8], 4
      %s618 = int_to_ptr.vmem [resolvable:$true] %s617
      %623 = dma.vmem_to_hbm [thread:$0]  %s618, 1024, %s6, [#allocation4], 64, 64, 4
    $region41: #{tpu_custom_call.1} parent=1 // pred_fallthru
      _
    // Predicated region
    $region42: #{tpu_custom_call.1} parent=1 // pred_check
      _
    $region43: #{tpu_custom_call.1} parent=1 // pred_check_branch
      %625 = sbr.rel (0) target = $region45
    $region44: #{tpu_custom_call.1} parent=1 // pred_region
      %s627 = ssub.s32 2048, 2048
      %628 = vsyncadd [#allocation10], %s627
      %s629 = sshll.u32 [#allocation9], 4
      %s630 = int_to_ptr.vmem [resolvable:$true] %s629
      %635 = dma.vmem_to_hbm [thread:$0]  %s630, 2048, %s7, [#allocation10], 128, 128, 8
    $region45: #{tpu_custom_call.1} parent=1 // pred_fallthru
      _
    // Predicated region
    $region46: #{tpu_custom_call.1} parent=1 // pred_check
      _
    $region47: #{tpu_custom_call.1} parent=1 // pred_check_branch
      %637 = sbr.rel (0) target = $region49
    $region48: #{tpu_custom_call.1} parent=1 // pred_region
      %638 = dma.done [#allocation4], 1024
    $region49: #{tpu_custom_call.1} parent=1 // pred_fallthru
      _
    // Predicated region
    $region50: #{tpu_custom_call.1} parent=1 // pred_check
      _
    $region51: #{tpu_custom_call.1} parent=1 // pred_check_branch
      %640 = sbr.rel (0) target = $region53
    $region52: #{tpu_custom_call.1} parent=1 // pred_region
      %641 = dma.done [#allocation10], 2048
    $region53: #{tpu_custom_call.1} parent=1 // pred_fallthru
      _
    %642 = vsyncpa [#allocation3], 1
    %643 = vsyncpa [#allocation6], 1
    %644 = vsyncpa [#allocation4], 1
    %645 = vsyncpa [#allocation10], 1

</llo_original>
